<compile_context>
chip_gen: v7x
topology: tpu7x:2x2x1
jax: 0.10.0
libtpu: 0.0.40
codegen_flags: <defaults>
</compile_context>

<pallas_src>
import functools

import jax
import jax.numpy as jnp
from jax import lax
from jax.experimental import pallas as pl
from jax.experimental.pallas import tpu as pltpu


# ----------------------------- tiling helper --------------------------------

def _pick_tile(dim, target):
    """Largest tile <= target that divides dim (falls back to the full dim)."""
    if dim <= target:
        return dim
    t = target
    while t > 8 and dim % t:
        t //= 2
    return t if (t > 0 and dim % t == 0) else dim


# ------------------------- fused RMSNorm + Linear ----------------------------
# y = relu?( (x * rsqrt(mean(x^2)) * ln_w) @ W ),  W stored as (K, N).
# Grid over (M, N) tiles; K (= d_model) is kept whole so the norm statistic is exact.

def _fused_norm_linear_kernel(x_ref, lnw_ref, w_ref, o_ref, *, eps, activation):
    x = x_ref[...].astype(jnp.float32)                       # (tm, K)
    var = jnp.mean(x * x, axis=-1, keepdims=True)
    xn = x * lax.rsqrt(var + eps) * lnw_ref[...].astype(jnp.float32)
    y = lax.dot_general(
        xn.astype(w_ref.dtype), w_ref[...],
        dimension_numbers=(((1,), (0,)), ((), ())),
        preferred_element_type=jnp.float32)                  # (tm, tn)
    if activation == "relu":
        y = jnp.maximum(y, 0.0)
    o_ref[...] = y.astype(o_ref.dtype)


def fused_norm_linear(x, ln_w, w, *, activation="none", eps=1e-6, tm=256, tn=256):
    M, K = x.shape
    _, N = w.shape
    tm = _pick_tile(M, tm)
    tn = _pick_tile(N, tn)
    kernel = functools.partial(_fused_norm_linear_kernel, eps=eps, activation=activation)
    return pl.pallas_call(
        kernel,
        out_shape=jax.ShapeDtypeStruct((M, N), x.dtype),
        grid=(M // tm, N // tn),
        in_specs=[
            pl.BlockSpec((tm, K), lambda i, j: (i, 0)),
            pl.BlockSpec((1, K), lambda i, j: (0, 0)),
            pl.BlockSpec((K, tn), lambda i, j: (0, j)),
        ],
        out_specs=pl.BlockSpec((tm, tn), lambda i, j: (i, j)),
        compiler_params=pltpu.CompilerParams(
            dimension_semantics=("parallel", "parallel")),
    )(x, ln_w.reshape(1, K), w)


# --------------------- tiled Linear (+bias / +residual) ----------------------
# y = act( x @ W (+ b) (+ resid) ), W stored as (K, N). Grid (M, N, K) with f32
# accumulator scratch; init at k==0, epilogue (bias/residual/act/cast) at k==last.

def _tiled_linear_kernel(*refs, activation, has_bias, has_residual):
    idx = 0
    x_ref = refs[idx]; idx += 1
    w_ref = refs[idx]; idx += 1
    b_ref = refs[idx] if has_bias else None
    idx += int(has_bias)
    r_ref = refs[idx] if has_residual else None
    idx += int(has_residual)
    o_ref = refs[idx]
    acc_ref = refs[idx + 1]

    k = pl.program_id(2)

    @pl.when(k == 0)
    def _():
        acc_ref[...] = jnp.zeros_like(acc_ref)

    acc_ref[...] += lax.dot_general(
        x_ref[...], w_ref[...],
        dimension_numbers=(((1,), (0,)), ((), ())),
        preferred_element_type=jnp.float32)

    @pl.when(k == pl.num_programs(2) - 1)
    def _():
        y = acc_ref[...]
        if has_bias:
            y = y + b_ref[...].astype(jnp.float32)
        if has_residual:
            y = y + r_ref[...].astype(jnp.float32)
        if activation == "relu":
            y = jnp.maximum(y, 0.0)
        o_ref[...] = y.astype(o_ref.dtype)


def tiled_linear(x, w, *, bias=None, residual=None, activation="none",
                 out_dtype=None, tm=256, tn=256, tk=512):
    M, K = x.shape
    _, N = w.shape
    tm = _pick_tile(M, tm)
    tn = _pick_tile(N, tn)
    tk = _pick_tile(K, tk)
    out_dtype = out_dtype if out_dtype is not None else x.dtype
    has_bias = bias is not None
    has_res = residual is not None

    kernel = functools.partial(_tiled_linear_kernel, activation=activation,
                               has_bias=has_bias, has_residual=has_res)
    in_specs = [
        pl.BlockSpec((tm, tk), lambda i, j, k: (i, k)),
        pl.BlockSpec((tk, tn), lambda i, j, k: (k, j)),
    ]
    args = [x, w]
    if has_bias:
        in_specs.append(pl.BlockSpec((1, tn), lambda i, j, k: (0, j)))
        args.append(bias.reshape(1, N))
    if has_res:
        in_specs.append(pl.BlockSpec((tm, tn), lambda i, j, k: (i, j)))
        args.append(residual)

    return pl.pallas_call(
        kernel,
        out_shape=jax.ShapeDtypeStruct((M, N), out_dtype),
        grid=(M // tm, N // tn, K // tk),
        in_specs=in_specs,
        out_specs=pl.BlockSpec((tm, tn), lambda i, j, k: (i, j)),
        scratch_shapes=[pltpu.VMEM((tm, tn), jnp.float32)],
        compiler_params=pltpu.CompilerParams(
            dimension_semantics=("parallel", "parallel", "arbitrary")),
    )(*args)


# ------------------------------ RMSNorm (standalone) -------------------------
# Only used for the final LayerNorm on the token-0 rows (features).

def _rmsnorm_kernel(x_ref, w_ref, o_ref, *, eps):
    x = x_ref[...].astype(jnp.float32)
    var = jnp.mean(x * x, axis=-1, keepdims=True)
    o_ref[...] = (x * lax.rsqrt(var + eps) * w_ref[...].astype(jnp.float32)
                  ).astype(o_ref.dtype)


def t5_rmsnorm(x, w, *, eps=1e-6, tm=256):
    M, H = x.shape
    tm = _pick_tile(M, tm)
    kernel = functools.partial(_rmsnorm_kernel, eps=eps)
    return pl.pallas_call(
        kernel,
        out_shape=jax.ShapeDtypeStruct((M, H), x.dtype),
        grid=(M // tm,),
        in_specs=[pl.BlockSpec((tm, H), lambda i: (i, 0)),
                  pl.BlockSpec((1, H), lambda i: (0, 0))],
        out_specs=pl.BlockSpec((tm, H), lambda i: (i, 0)),
        compiler_params=pltpu.CompilerParams(dimension_semantics=("parallel",)),
    )(x, w.reshape(1, H))


# ------------------------------ attention core -------------------------------
# One batch element per grid step. Reads the packed QKV slab (S, 3*nh*dk) and the
# shared (nh, S, S) bias (same VMEM block every step), loops heads in-kernel and
# writes one lane-dense (S, nh*dk) output slab. T5 has no 1/sqrt(d) scaling.

def _attention_kernel(qkv_ref, bias_ref, o_ref, *, nh, dk):
    inner = nh * dk
    outs = []
    for h in range(nh):                                       # static unroll over heads
        q = qkv_ref[0, :, h * dk:(h + 1) * dk]                # (S, dk)
        k = qkv_ref[0, :, inner + h * dk: inner + (h + 1) * dk]
        v = qkv_ref[0, :, 2 * inner + h * dk: 2 * inner + (h + 1) * dk]
        scores = lax.dot_general(                             # Q K^T without transpose
            q, k, dimension_numbers=(((1,), (1,)), ((), ())),
            preferred_element_type=jnp.float32)
        scores = scores + bias_ref[h].astype(jnp.float32)     # (S, S)
        m = jnp.max(scores, axis=-1, keepdims=True)
        p = jnp.exp(scores - m)
        denom = jnp.sum(p, axis=-1, keepdims=True)
        ctx = jnp.dot(p.astype(v.dtype), v, preferred_element_type=jnp.float32)
        ctx = ctx * pl.reciprocal(denom, approx=True)
        outs.append(ctx)
    o_ref[0] = jnp.concatenate(outs, axis=-1).astype(o_ref.dtype)


def t5_attention(qkv, pos_bias, *, nh, dk):
    B, S, _ = qkv.shape
    inner = nh * dk
    kernel = functools.partial(_attention_kernel, nh=nh, dk=dk)
    return pl.pallas_call(
        kernel,
        out_shape=jax.ShapeDtypeStruct((B, S, inner), qkv.dtype),
        grid=(B,),
        in_specs=[
            pl.BlockSpec((1, S, 3 * inner), lambda b: (b, 0, 0)),
            pl.BlockSpec((nh, S, S), lambda b: (0, 0, 0)),    # shared bias, not broadcast
        ],
        out_specs=pl.BlockSpec((1, S, inner), lambda b: (b, 0, 0)),
        compiler_params=pltpu.CompilerParams(dimension_semantics=("parallel",)),
    )(qkv, pos_bias)


# ------------------------- T5 glue (plain JAX) --------------------------------

def _relative_position_bucket(rel_pos, num_buckets=32, max_distance=128):
    # Bidirectional bucketing (encoder self-attention), matches HF T5.
    num_buckets //= 2
    buckets = jnp.where(rel_pos > 0, num_buckets, 0).astype(jnp.int32)
    rel_pos = jnp.abs(rel_pos)
    max_exact = num_buckets // 2
    is_small = rel_pos < max_exact
    rel_if_large = max_exact + (
        jnp.log(jnp.maximum(rel_pos, 1).astype(jnp.float32) / max_exact)
        / jnp.log(max_distance / max_exact)
        * (num_buckets - max_exact)
    ).astype(jnp.int32)
    rel_if_large = jnp.minimum(rel_if_large, num_buckets - 1)
    return buckets + jnp.where(is_small, rel_pos, rel_if_large)


def compute_position_bias(rel_emb, seq_len, num_buckets, max_distance):
    # rel_emb: (num_buckets, num_heads) -> bias (num_heads, S, S), kept in f32.
    ctx = jnp.arange(seq_len, dtype=jnp.int32)[:, None]
    mem = jnp.arange(seq_len, dtype=jnp.int32)[None, :]
    buckets = _relative_position_bucket(mem - ctx, num_buckets, max_distance)
    values = rel_emb.astype(jnp.float32)[buckets]             # (S, S, nh)
    return jnp.transpose(values, (2, 0, 1))                   # (nh, S, S)


# --------------------------- model forward ------------------------------------

def t5_encoder_forward(params, input_ids, cfg):
    B, S = input_ids.shape
    H, nh, dk = cfg["d_model"], cfg["num_heads"], cfg["d_kv"]
    inner = nh * dk
    eps = cfg["eps"]

    hidden = params["embedding"][input_ids].reshape(B * S, H)   # embedding gather (glue)

    # Layer-0 relative attention bias, shared by all layers (HF T5 behavior).
    pos_bias = compute_position_bias(
        params["rel_attn_bias"], S, cfg["num_buckets"], cfg["max_distance"])  # (nh, S, S)

    for layer in params["layers"]:
        # --- self-attention sub-block: fused RMSNorm + QKV, attention, out-proj + residual
        qkv = fused_norm_linear(hidden, layer["ln0"], layer["w_qkv"], eps=eps)   # (B*S, 3*inner)
        ctx = t5_attention(qkv.reshape(B, S, 3 * inner), pos_bias, nh=nh, dk=dk) # (B, S, inner)
        hidden = tiled_linear(ctx.reshape(B * S, inner), layer["w_o"],
                              residual=hidden)                                    # (B*S, H)
        # --- feed-forward sub-block: fused RMSNorm + Wi(+ReLU), Wo + residual
        ff = fused_norm_linear(hidden, layer["ln1"], layer["w_i"],
                               activation="relu", eps=eps)                        # (B*S, d_ff)
        hidden = tiled_linear(ff, layer["w_o_ff"], residual=hidden)               # (B*S, H)

    return hidden.reshape(B, S, H)


def t5_cls_forward(params, input_ids, cfg, ret_features=False, ret_emb=False):
    """Mirrors T5EncoderForSequenceClassification.forward (dropout disabled / eval)."""
    seq_hidden = t5_encoder_forward(params, input_ids, cfg)      # (B, S, H), pre-final-LN
    token0 = seq_hidden[:, 0, :]                                  # only token 0 is consumed,
    features = t5_rmsnorm(token0, params["final_ln"], eps=cfg["eps"])  # so final LN on those rows
    logits = tiled_linear(features, params["cls_w"], bias=params["cls_b"],
                          out_dtype=jnp.float32)
    if ret_features or ret_emb:
        return logits, features
    return logits


# ------------------------------ params ----------------------------------------

def init_raw_params(key, cfg):
    """nn.Linear-style [out, in] weights, f32 (as a checkpoint would provide)."""
    H, nh, dk, dff = cfg["d_model"], cfg["num_heads"], cfg["d_kv"], cfg["d_ff"]
    V, L, nb, n_out = cfg["vocab_size"], cfg["num_layers"], cfg["num_buckets"], cfg["num_output"]
    keys = iter(jax.random.split(key, 8 + 8 * L))

    def norm(k, shape, scale=0.02):
        return (scale * jax.random.normal(k, shape)).astype(jnp.float32)

    raw = {
        "embedding": norm(next(keys), (V, H), 1.0),
        "rel_attn_bias": norm(next(keys), (nb, nh)),
        "final_ln": jnp.ones((H,), jnp.float32),
        "cls_w": norm(next(keys), (n_out, H)),
        "cls_b": jnp.zeros((n_out,), jnp.float32),
        "layers": [],
    }
    for _ in range(L):
        raw["layers"].append({
            "ln0": jnp.ones((H,), jnp.float32),
            "wq": norm(next(keys), (nh * dk, H)),
            "wk": norm(next(keys), (nh * dk, H)),
            "wv": norm(next(keys), (nh * dk, H)),
            "wo": norm(next(keys), (H, nh * dk)),
            "ln1": jnp.ones((H,), jnp.float32),
            "wi": norm(next(keys), (dff, H)),
            "wo_ff": norm(next(keys), (H, dff)),
        })
    return raw


def preprocess_params(raw, cfg):
    """One-time: transpose weights to (K, N), fuse QKV, cast to compute dtype (bf16)."""
    dt = cfg["dtype"]
    p = {
        "embedding": raw["embedding"].astype(dt),
        "rel_attn_bias": raw["rel_attn_bias"].astype(jnp.float32),
        "final_ln": raw["final_ln"].astype(jnp.float32),
        "cls_w": raw["cls_w"].T.astype(dt),              # (H, n_out)
        "cls_b": raw["cls_b"].astype(jnp.float32),
        "layers": [],
    }
    for lyr in raw["layers"]:
        p["layers"].append({
            "ln0": lyr["ln0"].astype(jnp.float32),
            "w_qkv": jnp.concatenate(
                [lyr["wq"].T, lyr["wk"].T, lyr["wv"].T], axis=1).astype(dt),  # (H, 3*inner)
            "w_o": lyr["wo"].T.astype(dt),               # (inner, H)
            "ln1": lyr["ln1"].astype(jnp.float32),
            "w_i": lyr["wi"].T.astype(dt),               # (H, d_ff)
            "w_o_ff": lyr["wo_ff"].T.astype(dt),         # (d_ff, H)
        })
    return p


# -------------------------------- main -----------------------------------------

if __name__ == "__main__":
    cfg = dict(
        vocab_size=64,
        d_model=32,
        num_heads=4,
        d_kv=8,
        d_ff=64,
        num_layers=2,
        num_buckets=32,
        max_distance=128,
        num_output=3,
        eps=1e-6,
        dtype=jnp.bfloat16,
    )
    B, S = 2, 8

    root = jax.random.PRNGKey(0)
    k_param, k_ids = jax.random.split(root)
    params = preprocess_params(init_raw_params(k_param, cfg), cfg)
    input_ids = jax.random.randint(k_ids, (B, S), 0, cfg["vocab_size"], dtype=jnp.int32)

    logits = t5_cls_forward(params, input_ids, cfg)
    logits = jax.block_until_ready(logits)
    assert logits.shape == (B, cfg["num_output"])
    assert jnp.all(jnp.isfinite(logits.astype(jnp.float32)))
    print("KERNEL_OK")
</pallas_src>

<mosaic_0001>
module attributes {stable_mosaic.version = 11 : i64} {
  func.func @_fused_norm_linear_kernel(%arg0: i32, %arg1: i32, %arg2: memref<16x32xbf16, #tpu.memory_space<vmem>>, %arg3: memref<1x32xf32, #tpu.memory_space<vmem>>, %arg4: memref<32x96xbf16, #tpu.memory_space<vmem>>, %arg5: memref<16x96xbf16, #tpu.memory_space<vmem>>) attributes {dimension_semantics = [#tpu.dimension_semantics<parallel>, #tpu.dimension_semantics<parallel>], iteration_bounds = array<i64: 1, 1>, scalar_prefetch = 0 : i64, scratch_operands = 0 : i64, tpu.core_type = #tpu.core_type<tc>, window_params = [{transform_indices = @transform_0, window_bounds = array<i64: 16, 32>}, {pipeline_mode = #tpu.pipeline_mode<synchronous>, transform_indices = @transform_1, window_bounds = array<i64: 1, 32>}, {transform_indices = @transform_2, window_bounds = array<i64: 32, 96>}, {transform_indices = @transform_3, window_bounds = array<i64: 16, 96>}]} {
    %c0 = arith.constant 0 : index
    %c0_0 = arith.constant 0 : index
    %0 = vector.load %arg2[%c0, %c0_0] : memref<16x32xbf16, #tpu.memory_space<vmem>>, vector<16x32xbf16>
    %1 = arith.extf %0 : vector<16x32xbf16> to vector<16x32xf32>
    %2 = arith.mulf %1, %1 : vector<16x32xf32>
    %cst = arith.constant dense<0.000000e+00> : vector<16xf32>
    %3 = vector.multi_reduction <add>, %2, %cst [1] : vector<16x32xf32> to vector<16xf32>
    %4 = vector.shape_cast %3 : vector<16xf32> to vector<16x1xf32>
    %cst_1 = arith.constant 3.200000e+01 : f32
    %5 = vector.broadcast %cst_1 : f32 to vector<16x1xf32>
    %6 = arith.divf %4, %5 : vector<16x1xf32>
    %cst_2 = arith.constant 9.99999997E-7 : f32
    %7 = vector.broadcast %cst_2 : f32 to vector<16x1xf32>
    %8 = arith.addf %6, %7 : vector<16x1xf32>
    %9 = math.rsqrt %8 : vector<16x1xf32>
    %10 = vector.broadcast %9 : vector<16x1xf32> to vector<16x32xf32>
    %11 = arith.mulf %1, %10 : vector<16x32xf32>
    %c0_3 = arith.constant 0 : index
    %c0_4 = arith.constant 0 : index
    %12 = vector.load %arg3[%c0_3, %c0_4] : memref<1x32xf32, #tpu.memory_space<vmem>>, vector<1x32xf32>
    %13 = vector.broadcast %12 : vector<1x32xf32> to vector<16x32xf32>
    %14 = arith.mulf %11, %13 : vector<16x32xf32>
    %15 = arith.truncf %14 : vector<16x32xf32> to vector<16x32xbf16>
    %c0_5 = arith.constant 0 : index
    %c0_6 = arith.constant 0 : index
    %16 = vector.load %arg4[%c0_5, %c0_6] : memref<32x96xbf16, #tpu.memory_space<vmem>>, vector<32x96xbf16>
    %cst_7 = arith.constant dense<0.000000e+00> : vector<16x96xf32>
    %17 = tpu.matmul %15, %16, %cst_7 {dimension_numbers = #tpu.dot_dimension_numbers<[1], [0], [0], [1], [0, 0, 1, 1], [], []>} : vector<16x32xbf16>, vector<32x96xbf16>, vector<16x96xf32> -> vector<16x96xf32>
    %18 = arith.truncf %17 : vector<16x96xf32> to vector<16x96xbf16>
    %c0_8 = arith.constant 0 : index
    %c0_9 = arith.constant 0 : index
    %19 = vector.load %arg5[%c0_8, %c0_9] : memref<16x96xbf16, #tpu.memory_space<vmem>>, vector<16x96xbf16>
    tpu.vector_store %arg5[%c0_8, %c0_9], %18 {strides = array<i32>} : memref<16x96xbf16, #tpu.memory_space<vmem>>, vector<16x96xbf16>,
    return
  }
  func.func @transform_0(%arg0: i32, %arg1: i32) -> (i32, i32) {
    %c0_i32 = arith.constant 0 : i32
    %c0_i32_0 = arith.constant 0 : i32
    return %arg0, %c0_i32 : i32, i32
  }
  func.func @transform_1(%arg0: i32, %arg1: i32) -> (i32, i32) {
    %c0_i32 = arith.constant 0 : i32
    %c0_i32_0 = arith.constant 0 : i32
    %c0_i32_1 = arith.constant 0 : i32
    return %c0_i32, %c0_i32_0 : i32, i32
  }
  func.func @transform_2(%arg0: i32, %arg1: i32) -> (i32, i32) {
    %c0_i32 = arith.constant 0 : i32
    %c0_i32_0 = arith.constant 0 : i32
    return %c0_i32, %arg1 : i32, i32
  }
  func.func @transform_3(%arg0: i32, %arg1: i32) -> (i32, i32) {
    %c0_i32 = arith.constant 0 : i32
    return %arg0, %arg1 : i32, i32
  }
}

</mosaic_0001>

<llo_original>
// kernel: tpu_custom_call.1
$region0: #{tpu_custom_call.1}
  #allocation0 [shape = 'u32[]', space=smem, size = 0x4, offset = 0x4, fixed_abs, tag = 'smem constant byte address 0x4 - core index']
  #allocation1 [shape = 'u32[144,128]{1,0:T(1,128)}', space=vmem, size = 0x12000, scoped, tag = 'internal scratch']
  %s0 = inlined_call_operand.hbm [shape: bf16[16,32], index: 0, kind: input, shape index: {}]
  %s1 = inlined_call_operand.vmem [shape: f32[1,32], index: 1, kind: input, shape index: {}]
  %s2 = inlined_call_operand.hbm [shape: bf16[32,96], index: 2, kind: input, shape index: {}]
  %s3 = inlined_call_operand.hbm [shape: bf16[16,96], index: 3, kind: output, shape index: {}]
  %s4 = sld [smem:[#allocation0]]
  $region30: #{tpu_custom_call.1} parent=0
    _
  %s6 = ssub.s32 1, %s4
  %s7 = scalar_select 0, %s6, %s4
  $region1: #{tpu_custom_call.1} parent=0
    #allocation2 [shape = 'u8[4096]{0}', space=vmem, size = 0x1000, scoped, tag = 'input window, operand 0, single buffered']
    #allocation3 [shape = 's32[1]{0}', space=sflag, size = 0x4, scoped, tag = 'scoped memory for tpu_custom_call.1']
    #allocation4 [shape = 's32[1]{0}', space=sflag, size = 0x4, scoped, tag = 'scoped memory for tpu_custom_call.1']
    #allocation5 [shape = 'u8[8192]{0}', space=vmem, size = 0x2000, scoped, tag = 'input window, operand 2, single buffered']
    #allocation6 [shape = 's32[1]{0}', space=sflag, size = 0x4, scoped, tag = 'scoped memory for tpu_custom_call.1']
    #allocation7 [shape = 'u8[4096]{0}', space=vmem, size = 0x1000, scoped, tag = 'output window, operand 0, single buffered']
    %8 = vsyncpa [#allocation3], 0
    %9 = vsyncpa [#allocation6], 0
    %10 = vsyncpa [#allocation4], 0
    // Predicated region
    $region2: #{tpu_custom_call.1} parent=1 // pred_check
      _
    $region3: #{tpu_custom_call.1} parent=1 // pred_check_branch
      %12 = sbr.rel (0) target = $region5
    $region4: #{tpu_custom_call.1} parent=1 // pred_region
      %s14 = ssub.s32 128, 128
      %15 = vsyncadd [#allocation3], %s14
      %s16 = sshll.u32 [#allocation2], 4
      %s17 = int_to_ptr.vmem [resolvable:$true] %s16
      %22 = dma.hbm_to_vmem [thread:$0]  %s0, 128, %s17, [#allocation3], 64, 64, 4
    $region5: #{tpu_custom_call.1} parent=1 // pred_fallthru
      _
    // Predicated region
    $region6: #{tpu_custom_call.1} parent=1 // pred_check
      _
    $region7: #{tpu_custom_call.1} parent=1 // pred_check_branch
      %24 = sbr.rel (0) target = $region9
    $region8: #{tpu_custom_call.1} parent=1 // pred_region
      _
    $region9: #{tpu_custom_call.1} parent=1 // pred_fallthru
      _
    // Predicated region
    $region10: #{tpu_custom_call.1} parent=1 // pred_check
      _
    $region11: #{tpu_custom_call.1} parent=1 // pred_check_branch
      %26 = sbr.rel (0) target = $region13
    $region12: #{tpu_custom_call.1} parent=1 // pred_region
      %s28 = ssub.s32 256, 256
      %29 = vsyncadd [#allocation6], %s28
      %s30 = sshll.u32 [#allocation5], 4
      %s31 = int_to_ptr.vmem [resolvable:$true] %s30
      %36 = dma.hbm_to_vmem [thread:$0]  %s2, 256, %s31, [#allocation6], 64, 64, 4
    $region13: #{tpu_custom_call.1} parent=1 // pred_fallthru
      _
    // Predicated region
    $region14: #{tpu_custom_call.1} parent=1 // pred_check
      _
    $region15: #{tpu_custom_call.1} parent=1 // pred_check_branch
      %38 = sbr.rel (0) target = $region17
    $region16: #{tpu_custom_call.1} parent=1 // pred_region
      %39 = dma.done [#allocation3], 128
    $region17: #{tpu_custom_call.1} parent=1 // pred_fallthru
      _
    // Predicated region
    $region18: #{tpu_custom_call.1} parent=1 // pred_check
      _
    $region19: #{tpu_custom_call.1} parent=1 // pred_check_branch
      %41 = sbr.rel (0) target = $region21
    $region20: #{tpu_custom_call.1} parent=1 // pred_region
      %42 = dma.done [#allocation6], 256
    $region21: #{tpu_custom_call.1} parent=1 // pred_fallthru
      _
    %v44 = vld [vmem:[#allocation2] sm:$0xf]
    %v45 = vld [vmem:[#allocation2 + $0x4] sm:$0xf]
    %v46 = vunpack.c.l.bf16 %v44
    %v47 = vunpack.c.l.bf16 %v45
    %v48 = vmul.f32 %v46, %v46
    %v49 = vmul.f32 %v47, %v47
    %vm50 = vcmask 261120
    %v51 = vsel %vm50, %v48, 0.0
    %52 = vadd.xlane.f32.xlu0 %v51
    %v53 = vpop.xlane.xlu0 %52
    %v54 = vsel %vm50, %v49, 0.0
    %55 = vadd.xlane.f32.xlu0 %v54
    %v56 = vpop.xlane.xlu0 %55
    %v57 = vrcp.pop 32.0
    %v58 = vmul.f32 %v53, %v57
    %v59 = vmul.f32 %v56, %v57
    %v60 = vadd.f32 %v58, 1e-06
    %v61 = vadd.f32 %v59, 1e-06
    %v62 = vrsqrt.pop %v60
    %v63 = vrsqrt.pop %v61
    %v64 = vmul.f32 %v46, %v62
    %v65 = vmul.f32 %v47, %v63
    %v66 = vld [vmem:[%s1] sm:$0x1]
    %v68 = vlaneseq
    %v69 = vshrl.u32 %v68, 7
    %v70 = vsub.s32 0, %v69
    %v71 = vrot.slane %v66, %v70
    %v73 = vmul.f32 %v64, %v71
    %v74 = vmul.f32 %v65, %v71
    %v75 = vpack.c.bf16 %v74, %v73
    %v76 = vld [vmem:[#allocation5] sm:$0xf]
    %v77 = vld [vmem:[#allocation5 + $0x4] sm:$0xf]
    %v78 = vld [vmem:[#allocation5 + $0x8] sm:$0xf]
    %v79 = vld [vmem:[#allocation5 + $0xc] sm:$0xf]
    %v84 = vunpack.c.l.b16 %v76
    %v85 = vunpack.c.l.b16 %v77
    %v86 = vunpack.c.l.b16 %v78
    %v87 = vunpack.c.l.b16 %v79
    %v88 = vpack.c.b16 %v85, %v84
    %v89 = vpack.c.b16 %v87, %v86
    %v93 = vsel %vm50, %v75, 0
    %95 = vmatprep.subr.bf16.mxu0 0
    %96 = vmatpush1.bf16.msra.mxu0 %v88
    %97 = vmatprep.subr.bf16.mxu0 0
    %98 = vmatpush1.bf16.msra.mxu0 %v89
    %99 = vmatprep.subr.bf16.mxu0 0
    %100 = vmatpush1.bf16.msra.mxu0 0
    %101 = vmatprep.subr.bf16.mxu0 0
    %102 = vmatpush1.bf16.msra.mxu0 0
    %103 = vmatprep.subr.bf16.mxu0 0
    %104 = vmatpush1.bf16.msra.mxu0 0
    %105 = vmatprep.subr.bf16.mxu0 0
    %106 = vmatpush1.bf16.msra.mxu0 0
    %107 = vmatprep.subr.bf16.mxu0 0
    %108 = vmatpush1.bf16.msra.mxu0 0
    %109 = vmatprep.subr.bf16.mxu0 0
    %110 = vmatpush1.bf16.msra.mxu0 0
    %111 = vmatprep.subr.bf16.mxu0 0
    %112 = vmatpush1.bf16.msra.mxu0 0
    %113 = vmatprep.subr.bf16.mxu0 0
    %114 = vmatpush1.bf16.msra.mxu0 0
    %115 = vmatprep.subr.bf16.mxu0 0
    %116 = vmatpush1.bf16.msra.mxu0 0
    %117 = vmatprep.subr.bf16.mxu0 0
    %118 = vmatpush1.bf16.msra.mxu0 0
    %119 = vmatprep.subr.bf16.mxu0 0
    %120 = vmatpush1.bf16.msra.mxu0 0
    %121 = vmatprep.subr.bf16.mxu0 0
    %122 = vmatpush1.bf16.msra.mxu0 0
    %123 = vmatprep.subr.bf16.mxu0 0
    %124 = vmatpush1.bf16.msra.mxu0 0
    %125 = vmatprep.subr.bf16.mxu0 0
    %126 = vmatpush1.bf16.msra.mxu0 0
    %127 = vmatprep.mubr.bf16.mxu0 0
    %128 = vmatmul.mubr.bf16.gmra.mrb[0].mxu0 %v93
    %v129 = vpop.f32.mrb[0].mxu0
    %v130 = vadd.f32 0.0, %v129
    %v131 = vpop.f32.mrb[0].mxu0
    %v132 = vpop.f32.mrb[0].mxu0
    %v133 = vadd.f32 0.0, %v132
    %v134 = vpop.f32.mrb[0].mxu0
    %135 = vdwg.mxu0
    %v136 = vpack.c.bf16 %v133, %v130
    %v138 = vunpack.c.l.b16 %v136
    %v139 = vunpack.c.h.b16 %v136
    %v140 = vpack.c.b16 %v138, %v138
    %v141 = vpack.c.b16 %v139, %v139
    %vm144 = vcmask 781312
    %145 = vst.msk [vmem:[#allocation7] sm:$0xf] %vm144, %v140
    %146 = vst.msk [vmem:[#allocation7 + $0x4] sm:$0xf] %vm144, %v141
    // Predicated region
    $region22: #{tpu_custom_call.1} parent=1 // pred_check
      _
    $region23: #{tpu_custom_call.1} parent=1 // pred_check_branch
      %148 = sbr.rel (0) target = $region25
    $region24: #{tpu_custom_call.1} parent=1 // pred_region
      %s150 = ssub.s32 128, 128
      %151 = vsyncadd [#allocation4], %s150
      %s152 = sshll.u32 [#allocation7], 4
      %s153 = int_to_ptr.vmem [resolvable:$true] %s152
      %158 = dma.vmem_to_hbm [thread:$0]  %s153, 128, %s3, [#allocation4], 64, 64, 4
    $region25: #{tpu_custom_call.1} parent=1 // pred_fallthru
      _
    // Predicated region
    $region26: #{tpu_custom_call.1} parent=1 // pred_check
      _
    $region27: #{tpu_custom_call.1} parent=1 // pred_check_branch
      %160 = sbr.rel (0) target = $region29
    $region28: #{tpu_custom_call.1} parent=1 // pred_region
      %161 = dma.done [#allocation4], 128
    $region29: #{tpu_custom_call.1} parent=1 // pred_fallthru
      _
    %162 = vsyncpa [#allocation3], 1
    %163 = vsyncpa [#allocation6], 1
    %164 = vsyncpa [#allocation4], 1

</llo_original>
